<compile_context>
chip_gen: v6e
topology: v6e:2x2x1
jax: 0.10.0
libtpu: 0.0.40
codegen_flags: <defaults>
</compile_context>

<pallas_src>
import jax
import jax.numpy as jnp
from jax import lax
from jax.experimental import pallas as pl
from jax.experimental.pallas import tpu as pltpu


def _tap_masks(H, W):
    """(9, H*W) f32 validity masks; tap order t = dy*3 + dx (dy outermost)."""
    hh = jnp.arange(H).reshape(H, 1)
    ww = jnp.arange(W).reshape(1, W)
    masks = []
    for dy in range(3):
        for dx in range(3):
            oy, ox = dy - 1, dx - 1
            m = ((hh + oy >= 0) & (hh + oy < H) &
                 (ww + ox >= 0) & (ww + ox < W))
            masks.append(m.reshape(H * W).astype(jnp.float32))
    return jnp.stack(masks, axis=0)


def _fold_conv_params(w_hwio, b, CP, *, emit_ones_row):
    """Build (CP, 9*CP) weight matrix, column order (tap, in_channel).

    The bias is folded into the column that multiplies the all-ones stack row
    (center tap, padding row C).  If emit_ones_row, output row C of this conv
    reproduces the ones row so the *next* conv's bias fold keeps working.
    """
    kh, kw, C, Cout = w_hwio.shape
    assert (kh, kw) == (3, 3) and Cout == C
    w9 = w_hwio.reshape(9, C, C)                       # (tap, ci, co)
    wblk = jnp.transpose(w9, (2, 0, 1))                # (co, tap, ci)
    wblk = jnp.pad(wblk, ((0, CP - C), (0, 0), (0, CP - C)))   # (CP, 9, CP)
    wmat = wblk.reshape(CP, 9 * CP).astype(jnp.float32)
    ones_col = 4 * CP + C                              # center tap, ones-row slot
    wmat = wmat.at[:C, ones_col].set(b.astype(jnp.float32))
    if emit_ones_row:
        wmat = wmat.at[C, ones_col].set(1.0)
    return wmat


def _make_rb_kernel(CP, NL, offsets):
    # piece_t[:, p] = x[:, p + o_t]  <=>  np.roll(x, -o_t, axis=-1); wrapped
    # positions are zeroed by the masks, so the circular roll is exact.
    shifts = [(-o) % NL for o in offsets]

    def conv3x3_relu(xp, masks_full, wmat):
        # xp: (CP, NL)  masks_full: (9*CP, NL)  wmat: (CP, 9*CP)
        pieces = [xp if s == 0 else pltpu.roll(xp, shift=s, axis=1)
                  for s in shifts]
        stack = jnp.concatenate(pieces, axis=0) * masks_full   # (9*CP, NL)
        acc = jnp.dot(wmat, stack, preferred_element_type=jnp.float32)
        return jnp.maximum(acc, 0.0)                   # bias already folded in

    def kernel(x_ref, m_ref, w1_ref, w2_ref, o_ref):
        x = x_ref[...]                                 # (CP, NL), lane-dense
        masks = m_ref[...]                             # (9*CP, NL)
        fea = conv3x3_relu(x, masks, w1_ref[...])
        fea = conv3x3_relu(fea, masks, w2_ref[...])
        o_ref[...] = fea + x                           # residual add

    return kernel


def rb_forward(x_nchw, w1_hwio, b1, w2_hwio, b2):
    """x: (N, C, H, W) f32.  w*: (3, 3, Cin, Cout) HWIO.  b*: (C,)."""
    N, C, H, W = x_nchw.shape
    L = H * W
    NL = N * L
    CP = pl.cdiv(C + 1, 8) * 8                         # room for the ones row

    # Lane layout: lane index = n*L + h*W + w  (contiguous block per image).
    x_cl = jnp.transpose(x_nchw, (1, 0, 2, 3)).reshape(C, NL).astype(jnp.float32)
    x_pad = jnp.concatenate(
        [x_cl,
         jnp.ones((1, NL), jnp.float32),               # all-ones row (bias source)
         jnp.zeros((CP - C - 1, NL), jnp.float32)],
        axis=0)                                        # (CP, NL)

    masks = _tap_masks(H, W)                           # (9, L)
    masks_full = jnp.tile(jnp.repeat(masks, CP, axis=0), (1, N))   # (9*CP, NL)

    w1_mat = _fold_conv_params(w1_hwio, b1, CP, emit_ones_row=True)
    w2_mat = _fold_conv_params(w2_hwio, b2, CP, emit_ones_row=False)

    offsets = [(dy - 1) * W + (dx - 1) for dy in range(3) for dx in range(3)]
    kernel = _make_rb_kernel(CP, NL, offsets)

    flops = 2 * (2 * CP * (9 * CP) * NL)               # 2 convs, 2*M*K*N each
    bytes_accessed = 4 * (CP * NL + 9 * CP * NL + 2 * CP * 9 * CP + CP * NL)

    out_pad = pl.pallas_call(
        kernel,
        out_shape=jax.ShapeDtypeStruct((CP, NL), jnp.float32),
        grid_spec=pltpu.PrefetchScalarGridSpec(
            num_scalar_prefetch=0,
            grid=(1,),                                 # single step: whole batch
            in_specs=[
                pl.BlockSpec((CP, NL), lambda i: (0, 0)),        # x (all images)
                pl.BlockSpec((9 * CP, NL), lambda i: (0, 0)),    # tap masks
                pl.BlockSpec((CP, 9 * CP), lambda i: (0, 0)),    # conv1 weights(+bias)
                pl.BlockSpec((CP, 9 * CP), lambda i: (0, 0)),    # conv2 weights(+bias)
            ],
            out_specs=pl.BlockSpec((CP, NL), lambda i: (0, 0)),
        ),
        compiler_params=pltpu.CompilerParams(
            dimension_semantics=("arbitrary",)),
        cost_estimate=pl.CostEstimate(
            flops=flops, transcendentals=0, bytes_accessed=bytes_accessed),
    )(x_pad, masks_full, w1_mat, w2_mat)

    out = out_pad[:C].reshape(C, N, H, W)
    return jnp.transpose(out, (1, 0, 2, 3))


def rb_reference(x_nchw, w1_hwio, b1, w2_hwio, b2):
    """Pure-JAX reference in NCHW (matches PyTorch RB.forward)."""
    dn = ("NCHW", "HWIO", "NCHW")
    fea = lax.conv_general_dilated(x_nchw, w1_hwio, (1, 1), "SAME",
                                   dimension_numbers=dn) + b1.reshape(1, -1, 1, 1)
    fea = jnp.maximum(fea, 0.0)
    fea = lax.conv_general_dilated(fea, w2_hwio, (1, 1), "SAME",
                                   dimension_numbers=dn) + b2.reshape(1, -1, 1, 1)
    fea = jnp.maximum(fea, 0.0)
    return fea + x_nchw


if __name__ == "__main__":
    N, C, H, W = 2, 4, 16, 16

    key = jax.random.PRNGKey(0)
    kx, kw1, kb1, kw2, kb2 = jax.random.split(key, 5)

    # PyTorch-style NCHW input.
    x_nchw = jax.random.normal(kx, (N, C, H, W), dtype=jnp.float32)

    # Deterministic "Conv2d(channels, channels, 3, 1, 1)" parameters (HWIO).
    fan_in = C * 3 * 3
    bound = 1.0 / (fan_in ** 0.5)
    w1 = jax.random.uniform(kw1, (3, 3, C, C), jnp.float32, -bound, bound)
    b1 = jax.random.uniform(kb1, (C,), jnp.float32, -bound, bound)
    w2 = jax.random.uniform(kw2, (3, 3, C, C), jnp.float32, -bound, bound)
    b2 = jax.random.uniform(kb2, (C,), jnp.float32, -bound, bound)

    out = rb_forward(x_nchw, w1, b1, w2, b2)
    out = jax.block_until_ready(out)

    ref = rb_reference(x_nchw, w1, b1, w2, b2)
    assert out.shape == (N, C, H, W)
    assert jnp.allclose(out, ref, atol=2e-5, rtol=2e-5), float(
        jnp.max(jnp.abs(out - ref)))

    print("KERNEL_OK")
</pallas_src>

<mosaic_0001>
module attributes {stable_mosaic.version = 11 : i64} {
  func.func @kernel(%arg0: i32, %arg1: memref<8x512xf32, #tpu.memory_space<vmem>>, %arg2: memref<72x512xf32, #tpu.memory_space<vmem>>, %arg3: memref<8x72xf32, #tpu.memory_space<vmem>>, %arg4: memref<8x72xf32, #tpu.memory_space<vmem>>, %arg5: memref<8x512xf32, #tpu.memory_space<vmem>>) attributes {dimension_semantics = [#tpu.dimension_semantics<arbitrary>], iteration_bounds = array<i64: 1>, scalar_prefetch = 0 : i64, scratch_operands = 0 : i64, tpu.core_type = #tpu.core_type<tc>, window_params = [{pipeline_mode = #tpu.pipeline_mode<synchronous>, transform_indices = @transform_0, window_bounds = array<i64: 8, 512>}, {pipeline_mode = #tpu.pipeline_mode<synchronous>, transform_indices = @transform_1, window_bounds = array<i64: 72, 512>}, {pipeline_mode = #tpu.pipeline_mode<synchronous>, transform_indices = @transform_2, window_bounds = array<i64: 8, 72>}, {pipeline_mode = #tpu.pipeline_mode<synchronous>, transform_indices = @transform_3, window_bounds = array<i64: 8, 72>}, {pipeline_mode = #tpu.pipeline_mode<synchronous>, transform_indices = @transform_4, window_bounds = array<i64: 8, 512>}]} {
    %c0 = arith.constant 0 : index
    %c0_0 = arith.constant 0 : index
    %0 = vector.load %arg1[%c0, %c0_0] : memref<8x512xf32, #tpu.memory_space<vmem>>, vector<8x512xf32>
    %c0_1 = arith.constant 0 : index
    %c0_2 = arith.constant 0 : index
    %1 = vector.load %arg2[%c0_1, %c0_2] : memref<72x512xf32, #tpu.memory_space<vmem>>, vector<72x512xf32>
    %c0_3 = arith.constant 0 : index
    %c0_4 = arith.constant 0 : index
    %2 = vector.load %arg3[%c0_3, %c0_4] : memref<8x72xf32, #tpu.memory_space<vmem>>, vector<8x72xf32>
    %c17_i32 = arith.constant 17 : i32
    %3 = tpu.dynamic_rotate %0 by %c17_i32 dim 1 : vector<8x512xf32>, i32 -> vector<8x512xf32>
    %c16_i32 = arith.constant 16 : i32
    %4 = tpu.dynamic_rotate %0 by %c16_i32 dim 1 : vector<8x512xf32>, i32 -> vector<8x512xf32>
    %c15_i32 = arith.constant 15 : i32
    %5 = tpu.dynamic_rotate %0 by %c15_i32 dim 1 : vector<8x512xf32>, i32 -> vector<8x512xf32>
    %c1_i32 = arith.constant 1 : i32
    %6 = tpu.dynamic_rotate %0 by %c1_i32 dim 1 : vector<8x512xf32>, i32 -> vector<8x512xf32>
    %c511_i32 = arith.constant 511 : i32
    %7 = tpu.dynamic_rotate %0 by %c511_i32 dim 1 : vector<8x512xf32>, i32 -> vector<8x512xf32>
    %c497_i32 = arith.constant 497 : i32
    %8 = tpu.dynamic_rotate %0 by %c497_i32 dim 1 : vector<8x512xf32>, i32 -> vector<8x512xf32>
    %c496_i32 = arith.constant 496 : i32
    %9 = tpu.dynamic_rotate %0 by %c496_i32 dim 1 : vector<8x512xf32>, i32 -> vector<8x512xf32>
    %c495_i32 = arith.constant 495 : i32
    %10 = tpu.dynamic_rotate %0 by %c495_i32 dim 1 : vector<8x512xf32>, i32 -> vector<8x512xf32>
    %11 = tpu.concatenate %3, %4, %5, %6, %0, %7, %8, %9, %10 in 0 : vector<8x512xf32>, vector<8x512xf32>, vector<8x512xf32>, vector<8x512xf32>, vector<8x512xf32>, vector<8x512xf32>, vector<8x512xf32>, vector<8x512xf32>, vector<8x512xf32> -> vector<72x512xf32>
    %12 = arith.mulf %11, %1 : vector<72x512xf32>
    %cst = arith.constant dense<0.000000e+00> : vector<8x512xf32>
    %13 = tpu.matmul %2, %12, %cst {dimension_numbers = #tpu.dot_dimension_numbers<[1], [0], [0], [1], [0, 0, 1, 1], [], []>} : vector<8x72xf32>, vector<72x512xf32>, vector<8x512xf32> -> vector<8x512xf32>
    %cst_5 = arith.constant 0.000000e+00 : f32
    %14 = vector.broadcast %cst_5 : f32 to vector<8x512xf32>
    %15 = arith.maximumf %13, %14 : vector<8x512xf32>
    %c0_6 = arith.constant 0 : index
    %c0_7 = arith.constant 0 : index
    %16 = vector.load %arg4[%c0_6, %c0_7] : memref<8x72xf32, #tpu.memory_space<vmem>>, vector<8x72xf32>
    %c17_i32_8 = arith.constant 17 : i32
    %17 = tpu.dynamic_rotate %15 by %c17_i32_8 dim 1 : vector<8x512xf32>, i32 -> vector<8x512xf32>
    %c16_i32_9 = arith.constant 16 : i32
    %18 = tpu.dynamic_rotate %15 by %c16_i32_9 dim 1 : vector<8x512xf32>, i32 -> vector<8x512xf32>
    %c15_i32_10 = arith.constant 15 : i32
    %19 = tpu.dynamic_rotate %15 by %c15_i32_10 dim 1 : vector<8x512xf32>, i32 -> vector<8x512xf32>
    %c1_i32_11 = arith.constant 1 : i32
    %20 = tpu.dynamic_rotate %15 by %c1_i32_11 dim 1 : vector<8x512xf32>, i32 -> vector<8x512xf32>
    %c511_i32_12 = arith.constant 511 : i32
    %21 = tpu.dynamic_rotate %15 by %c511_i32_12 dim 1 : vector<8x512xf32>, i32 -> vector<8x512xf32>
    %c497_i32_13 = arith.constant 497 : i32
    %22 = tpu.dynamic_rotate %15 by %c497_i32_13 dim 1 : vector<8x512xf32>, i32 -> vector<8x512xf32>
    %c496_i32_14 = arith.constant 496 : i32
    %23 = tpu.dynamic_rotate %15 by %c496_i32_14 dim 1 : vector<8x512xf32>, i32 -> vector<8x512xf32>
    %c495_i32_15 = arith.constant 495 : i32
    %24 = tpu.dynamic_rotate %15 by %c495_i32_15 dim 1 : vector<8x512xf32>, i32 -> vector<8x512xf32>
    %25 = tpu.concatenate %17, %18, %19, %20, %15, %21, %22, %23, %24 in 0 : vector<8x512xf32>, vector<8x512xf32>, vector<8x512xf32>, vector<8x512xf32>, vector<8x512xf32>, vector<8x512xf32>, vector<8x512xf32>, vector<8x512xf32>, vector<8x512xf32> -> vector<72x512xf32>
    %26 = arith.mulf %25, %1 : vector<72x512xf32>
    %cst_16 = arith.constant dense<0.000000e+00> : vector<8x512xf32>
    %27 = tpu.matmul %16, %26, %cst_16 {dimension_numbers = #tpu.dot_dimension_numbers<[1], [0], [0], [1], [0, 0, 1, 1], [], []>} : vector<8x72xf32>, vector<72x512xf32>, vector<8x512xf32> -> vector<8x512xf32>
    %cst_17 = arith.constant 0.000000e+00 : f32
    %28 = vector.broadcast %cst_17 : f32 to vector<8x512xf32>
    %29 = arith.maximumf %27, %28 : vector<8x512xf32>
    %30 = arith.addf %29, %0 : vector<8x512xf32>
    %c0_18 = arith.constant 0 : index
    %c0_19 = arith.constant 0 : index
    %31 = vector.load %arg5[%c0_18, %c0_19] : memref<8x512xf32, #tpu.memory_space<vmem>>, vector<8x512xf32>
    tpu.vector_store %arg5[%c0_18, %c0_19], %30 {strides = array<i32>} : memref<8x512xf32, #tpu.memory_space<vmem>>, vector<8x512xf32>,
    return
  }
  func.func @transform_0(%arg0: i32) -> (i32, i32) {
    %c0_i32 = arith.constant 0 : i32
    %c0_i32_0 = arith.constant 0 : i32
    %c0_i32_1 = arith.constant 0 : i32
    return %c0_i32, %c0_i32_0 : i32, i32
  }
  func.func @transform_1(%arg0: i32) -> (i32, i32) {
    %c0_i32 = arith.constant 0 : i32
    %c0_i32_0 = arith.constant 0 : i32
    %c0_i32_1 = arith.constant 0 : i32
    return %c0_i32, %c0_i32_0 : i32, i32
  }
  func.func @transform_2(%arg0: i32) -> (i32, i32) {
    %c0_i32 = arith.constant 0 : i32
    %c0_i32_0 = arith.constant 0 : i32
    %c0_i32_1 = arith.constant 0 : i32
    return %c0_i32, %c0_i32_0 : i32, i32
  }
  func.func @transform_3(%arg0: i32) -> (i32, i32) {
    %c0_i32 = arith.constant 0 : i32
    %c0_i32_0 = arith.constant 0 : i32
    %c0_i32_1 = arith.constant 0 : i32
    return %c0_i32, %c0_i32_0 : i32, i32
  }
  func.func @transform_4(%arg0: i32) -> (i32, i32) {
    %c0_i32 = arith.constant 0 : i32
    %c0_i32_0 = arith.constant 0 : i32
    %c0_i32_1 = arith.constant 0 : i32
    return %c0_i32, %c0_i32_0 : i32, i32
  }
}

</mosaic_0001>

<llo_original>
// kernel: tpu_custom_call.1
$region0: #{tpu_custom_call.1}
  #allocation0 [shape = 'u32[]', space=smem, size = 0x4, offset = 0x4, fixed_abs, tag = 'smem constant byte address 0x4 - core index']
  #allocation1 [shape = 'u32[144,128]{1,0:T(1,128)}', space=vmem, size = 0x12000, scoped, tag = 'internal scratch']
  %s0 = inlined_call_operand.hbm [shape: f32[8,512], index: 0, kind: input, shape index: {}]
  %s1 = inlined_call_operand.hbm [shape: f32[72,512], index: 1, kind: input, shape index: {}]
  %s2 = inlined_call_operand.hbm [shape: f32[8,72], index: 2, kind: input, shape index: {}]
  %s3 = inlined_call_operand.hbm [shape: f32[8,72], index: 3, kind: input, shape index: {}]
  %s4 = inlined_call_operand.hbm [shape: f32[8,512], index: 4, kind: output, shape index: {}]
  %s5 = sld [smem:[#allocation0]]
  $region42: #{tpu_custom_call.1} parent=0
    _
  %s7 = ssub.s32 1, %s5
  %s8 = scalar_select 0, %s7, %s5
  $region1: #{tpu_custom_call.1} parent=0
    #allocation2 [shape = 'u8[16384]{0}', space=vmem, size = 0x4000, scoped, tag = 'input window, operand 0, single buffered']
    #allocation3 [shape = 's32[1]{0}', space=sflag, size = 0x4, scoped, tag = 'scoped memory for tpu_custom_call.1']
    #allocation4 [shape = 's32[1]{0}', space=sflag, size = 0x4, scoped, tag = 'scoped memory for tpu_custom_call.1']
    #allocation5 [shape = 'u8[147456]{0}', space=vmem, size = 0x24000, scoped, tag = 'input window, operand 1, single buffered']
    #allocation6 [shape = 's32[1]{0}', space=sflag, size = 0x4, scoped, tag = 'scoped memory for tpu_custom_call.1']
    #allocation7 [shape = 'u8[4096]{0}', space=vmem, size = 0x1000, scoped, tag = 'input window, operand 2, single buffered']
    #allocation8 [shape = 'u8[4096]{0}', space=vmem, size = 0x1000, scoped, tag = 'input window, operand 3, single buffered']
    #allocation9 [shape = 's32[1]{0}', space=sflag, size = 0x4, scoped, tag = 'scoped memory for tpu_custom_call.1']
    #allocation10 [shape = 'u8[16384]{0}', space=vmem, size = 0x4000, scoped, tag = 'output window, operand 0, single buffered']
    %9 = vsyncpa [#allocation3], 0
    %10 = vsyncpa [#allocation6], 0
    %11 = vsyncpa [#allocation9], 0
    %12 = vsyncpa [#allocation4], 0
    // Predicated region
    $region2: #{tpu_custom_call.1} parent=1 // pred_check
      _
    $region3: #{tpu_custom_call.1} parent=1 // pred_check_branch
      %14 = sbr.rel (0) target = $region5
    $region4: #{tpu_custom_call.1} parent=1 // pred_region
      %s16 = ssub.s32 512, 512
      %17 = vsyncadd [#allocation3], %s16
      %s19 = sshll.u32 [#allocation2], 4
      %s20 = int_to_ptr.vmem [resolvable:$true] %s19
      %22 = dma.hbm_to_vmem [thread:$0]  %s0, 512, %s20, [#allocation3]
    $region5: #{tpu_custom_call.1} parent=1 // pred_fallthru
      _
    // Predicated region
    $region6: #{tpu_custom_call.1} parent=1 // pred_check
      _
    $region7: #{tpu_custom_call.1} parent=1 // pred_check_branch
      %24 = sbr.rel (0) target = $region9
    $region8: #{tpu_custom_call.1} parent=1 // pred_region
      %s26 = ssub.s32 4608, 4608
      %27 = vsyncadd [#allocation6], %s26
      %s28 = sshll.u32 [#allocation5], 4
      %s29 = int_to_ptr.vmem [resolvable:$true] %s28
      %34 = dma.hbm_to_vmem [thread:$0]  %s1, 4608, %s29, [#allocation6], 512, 512, 32
    $region9: #{tpu_custom_call.1} parent=1 // pred_fallthru
      _
    // Predicated region
    $region10: #{tpu_custom_call.1} parent=1 // pred_check
      _
    $region11: #{tpu_custom_call.1} parent=1 // pred_check_branch
      %36 = sbr.rel (0) target = $region13
    $region12: #{tpu_custom_call.1} parent=1 // pred_region
      %s38 = ssub.s32 128, 128
      %39 = vsyncadd [#allocation6], %s38
      %s41 = sshll.u32 [#allocation7], 4
      %s42 = int_to_ptr.vmem [resolvable:$true] %s41
      %44 = dma.hbm_to_vmem [thread:$0]  %s2, 128, %s42, [#allocation6]
    $region13: #{tpu_custom_call.1} parent=1 // pred_fallthru
      _
    // Predicated region
    $region14: #{tpu_custom_call.1} parent=1 // pred_check
      _
    $region15: #{tpu_custom_call.1} parent=1 // pred_check_branch
      %46 = sbr.rel (0) target = $region17
    $region16: #{tpu_custom_call.1} parent=1 // pred_region
      %s48 = ssub.s32 128, 128
      %49 = vsyncadd [#allocation9], %s48
      %s51 = sshll.u32 [#allocation8], 4
      %s52 = int_to_ptr.vmem [resolvable:$true] %s51
      %54 = dma.hbm_to_vmem [thread:$0]  %s3, 128, %s52, [#allocation9]
    $region17: #{tpu_custom_call.1} parent=1 // pred_fallthru
      _
    // Predicated region
    $region18: #{tpu_custom_call.1} parent=1 // pred_check
      _
    $region19: #{tpu_custom_call.1} parent=1 // pred_check_branch
      %56 = sbr.rel (0) target = $region21
    $region20: #{tpu_custom_call.1} parent=1 // pred_region
      %57 = dma.done [#allocation3], 512
    $region21: #{tpu_custom_call.1} parent=1 // pred_fallthru
      _
    // Predicated region
    $region22: #{tpu_custom_call.1} parent=1 // pred_check
      _
    $region23: #{tpu_custom_call.1} parent=1 // pred_check_branch
      %59 = sbr.rel (0) target = $region25
    $region24: #{tpu_custom_call.1} parent=1 // pred_region
      %60 = dma.done [#allocation6], 4608
    $region25: #{tpu_custom_call.1} parent=1 // pred_fallthru
      _
    // Predicated region
    $region26: #{tpu_custom_call.1} parent=1 // pred_check
      _
    $region27: #{tpu_custom_call.1} parent=1 // pred_check_branch
      %62 = sbr.rel (0) target = $region29
    $region28: #{tpu_custom_call.1} parent=1 // pred_region
      %63 = dma.done [#allocation6], 128
    $region29: #{tpu_custom_call.1} parent=1 // pred_fallthru
      _
    // Predicated region
    $region30: #{tpu_custom_call.1} parent=1 // pred_check
      _
    $region31: #{tpu_custom_call.1} parent=1 // pred_check_branch
      %65 = sbr.rel (0) target = $region33
    $region32: #{tpu_custom_call.1} parent=1 // pred_region
      %66 = dma.done [#allocation9], 128
    $region33: #{tpu_custom_call.1} parent=1 // pred_fallthru
      _
    %v67 = vld [vmem:[#allocation2] sm:$0xff]
    %v68 = vld [vmem:[#allocation2 + $0x8] sm:$0xff]
    %v69 = vld [vmem:[#allocation2 + $0x10] sm:$0xff]
    %v70 = vld [vmem:[#allocation2 + $0x18] sm:$0xff]
    %v71 = vld [vmem:[#allocation5] sm:$0xff]
    %v72 = vld [vmem:[#allocation5 + $0x8] sm:$0xff]
    %v73 = vld [vmem:[#allocation5 + $0x10] sm:$0xff]
    %v74 = vld [vmem:[#allocation5 + $0x18] sm:$0xff]
    %v75 = vld [vmem:[#allocation5 + $0x20] sm:$0xff]
    %v76 = vld [vmem:[#allocation5 + $0x28] sm:$0xff]
    %v77 = vld [vmem:[#allocation5 + $0x30] sm:$0xff]
    %v78 = vld [vmem:[#allocation5 + $0x38] sm:$0xff]
    %v79 = vld [vmem:[#allocation5 + $0x40] sm:$0xff]
    %v80 = vld [vmem:[#allocation5 + $0x48] sm:$0xff]
    %v81 = vld [vmem:[#allocation5 + $0x50] sm:$0xff]
    %v82 = vld [vmem:[#allocation5 + $0x58] sm:$0xff]
    %v83 = vld [vmem:[#allocation5 + $0x60] sm:$0xff]
    %v84 = vld [vmem:[#allocation5 + $0x68] sm:$0xff]
    %v85 = vld [vmem:[#allocation5 + $0x70] sm:$0xff]
    %v86 = vld [vmem:[#allocation5 + $0x78] sm:$0xff]
    %v87 = vld [vmem:[#allocation5 + $0x80] sm:$0xff]
    %v88 = vld [vmem:[#allocation5 + $0x88] sm:$0xff]
    %v89 = vld [vmem:[#allocation5 + $0x90] sm:$0xff]
    %v90 = vld [vmem:[#allocation5 + $0x98] sm:$0xff]
    %v91 = vld [vmem:[#allocation5 + $0xa0] sm:$0xff]
    %v92 = vld [vmem:[#allocation5 + $0xa8] sm:$0xff]
    %v93 = vld [vmem:[#allocation5 + $0xb0] sm:$0xff]
    %v94 = vld [vmem:[#allocation5 + $0xb8] sm:$0xff]
    %v95 = vld [vmem:[#allocation5 + $0xc0] sm:$0xff]
    %v96 = vld [vmem:[#allocation5 + $0xc8] sm:$0xff]
    %v97 = vld [vmem:[#allocation5 + $0xd0] sm:$0xff]
    %v98 = vld [vmem:[#allocation5 + $0xd8] sm:$0xff]
    %v99 = vld [vmem:[#allocation5 + $0xe0] sm:$0xff]
    %v100 = vld [vmem:[#allocation5 + $0xe8] sm:$0xff]
    %v101 = vld [vmem:[#allocation5 + $0xf0] sm:$0xff]
    %v102 = vld [vmem:[#allocation5 + $0xf8] sm:$0xff]
    %v103 = vld [vmem:[#allocation5 + $0x100] sm:$0xff]
    %v104 = vld [vmem:[#allocation5 + $0x108] sm:$0xff]
    %v105 = vld [vmem:[#allocation5 + $0x110] sm:$0xff]
    %v106 = vld [vmem:[#allocation5 + $0x118] sm:$0xff]
    %v107 = vld [vmem:[#allocation7] sm:$0xff]
    %108 = vrot.lane.b32.xlu0 %v67, 17
    %v109 = vpop.permute.xlu0 %108
    %110 = vrot.lane.b32.xlu0 %v68, 17
    %v111 = vpop.permute.xlu0 %110
    %112 = vrot.lane.b32.xlu0 %v69, 17
    %v113 = vpop.permute.xlu0 %112
    %114 = vrot.lane.b32.xlu0 %v70, 17
    %v115 = vpop.permute.xlu0 %114
    %v116 = vlaneseq
    %v117 = vand.u32 %v116, 127
    %vm118 = vcmp.lt.s32.totalorder %v117, 17
    %v119 = vsel %vm118, %v113, %v115
    %v120 = vsel %vm118, %v111, %v113
    %v121 = vsel %vm118, %v109, %v111
    %v122 = vsel %vm118, %v115, %v109
    %123 = vrot.lane.b32.xlu0 %v67, 16
    %v124 = vpop.permute.xlu0 %123
    %125 = vrot.lane.b32.xlu0 %v68, 16
    %v126 = vpop.permute.xlu0 %125
    %127 = vrot.lane.b32.xlu0 %v69, 16
    %v128 = vpop.permute.xlu0 %127
    %129 = vrot.lane.b32.xlu0 %v70, 16
    %v130 = vpop.permute.xlu0 %129
    %vm131 = vcmp.lt.s32.totalorder %v117, 16
    %v132 = vsel %vm131, %v128, %v130
    %v133 = vsel %vm131, %v126, %v128
    %v134 = vsel %vm131, %v124, %v126
    %v135 = vsel %vm131, %v130, %v124
    %136 = vrot.lane.b32.xlu0 %v67, 15
    %v137 = vpop.permute.xlu0 %136
    %138 = vrot.lane.b32.xlu0 %v68, 15
    %v139 = vpop.permute.xlu0 %138
    %140 = vrot.lane.b32.xlu0 %v69, 15
    %v141 = vpop.permute.xlu0 %140
    %142 = vrot.lane.b32.xlu0 %v70, 15
    %v143 = vpop.permute.xlu0 %142
    %vm144 = vcmp.lt.s32.totalorder %v117, 15
    %v145 = vsel %vm144, %v141, %v143
    %v146 = vsel %vm144, %v139, %v141
    %v147 = vsel %vm144, %v137, %v139
    %v148 = vsel %vm144, %v143, %v137
    %149 = vrot.lane.b32.xlu0 %v67, 1
    %v150 = vpop.permute.xlu0 %149
    %151 = vrot.lane.b32.xlu0 %v68, 1
    %v152 = vpop.permute.xlu0 %151
    %153 = vrot.lane.b32.xlu0 %v69, 1
    %v154 = vpop.permute.xlu0 %153
    %155 = vrot.lane.b32.xlu0 %v70, 1
    %v156 = vpop.permute.xlu0 %155
    %vm157 = vcmp.lt.s32.totalorder %v117, 1
    %v158 = vsel %vm157, %v154, %v156
    %v159 = vsel %vm157, %v152, %v154
    %v160 = vsel %vm157, %v150, %v152
    %v161 = vsel %vm157, %v156, %v150
    %162 = vrot.lane.b32.xlu0 %v67, 127
    %v163 = vpop.permute.xlu0 %162
    %164 = vrot.lane.b32.xlu0 %v68, 127
    %v165 = vpop.permute.xlu0 %164
    %166 = vrot.lane.b32.xlu0 %v69, 127
    %v167 = vpop.permute.xlu0 %166
    %168 = vrot.lane.b32.xlu0 %v70, 127
    %v169 = vpop.permute.xlu0 %168
    %vm170 = vcmp.lt.s32.totalorder %v117, 127
    %v171 = vsel %vm170, %v167, %v169
    %v172 = vsel %vm170, %v165, %v167
    %v173 = vsel %vm170, %v163, %v165
    %v174 = vsel %vm170, %v169, %v163
    %175 = vrot.lane.b32.xlu0 %v67, 113
    %v176 = vpop.permute.xlu0 %175
    %177 = vrot.lane.b32.xlu0 %v68, 113
    %v178 = vpop.permute.xlu0 %177
    %179 = vrot.lane.b32.xlu0 %v69, 113
    %v180 = vpop.permute.xlu0 %179
    %181 = vrot.lane.b32.xlu0 %v70, 113
    %v182 = vpop.permute.xlu0 %181
    %vm183 = vcmp.lt.s32.totalorder %v117, 113
    %v184 = vsel %vm183, %v180, %v182
    %v185 = vsel %vm183, %v178, %v180
    %v186 = vsel %vm183, %v176, %v178
    %v187 = vsel %vm183, %v182, %v176
    %188 = vrot.lane.b32.xlu0 %v67, 112
    %v189 = vpop.permute.xlu0 %188
    %190 = vrot.lane.b32.xlu0 %v68, 112
    %v191 = vpop.permute.xlu0 %190
    %192 = vrot.lane.b32.xlu0 %v69, 112
    %v193 = vpop.permute.xlu0 %192
    %194 = vrot.lane.b32.xlu0 %v70, 112
    %v195 = vpop.permute.xlu0 %194
    %vm196 = vcmp.lt.s32.totalorder %v117, 112
    %v197 = vsel %vm196, %v193, %v195
    %v198 = vsel %vm196, %v191, %v193
    %v199 = vsel %vm196, %v189, %v191
    %v200 = vsel %vm196, %v195, %v189
    %201 = vrot.lane.b32.xlu0 %v67, 111
    %v202 = vpop.permute.xlu0 %201
    %203 = vrot.lane.b32.xlu0 %v68, 111
    %v204 = vpop.permute.xlu0 %203
    %205 = vrot.lane.b32.xlu0 %v69, 111
    %v206 = vpop.permute.xlu0 %205
    %207 = vrot.lane.b32.xlu0 %v70, 111
    %v208 = vpop.permute.xlu0 %207
    %vm209 = vcmp.lt.s32.totalorder %v117, 111
    %v210 = vsel %vm209, %v206, %v208
    %v211 = vsel %vm209, %v204, %v206
    %v212 = vsel %vm209, %v202, %v204
    %v213 = vsel %vm209, %v208, %v202
    %v214 = vmul.f32 %v122, %v71
    %v215 = vmul.f32 %v121, %v72
    %v216 = vmul.f32 %v120, %v73
    %v217 = vmul.f32 %v119, %v74
    %v218 = vmul.f32 %v135, %v75
    %v219 = vmul.f32 %v134, %v76
    %v220 = vmul.f32 %v133, %v77
    %v221 = vmul.f32 %v132, %v78
    %v222 = vmul.f32 %v148, %v79
    %v223 = vmul.f32 %v147, %v80
    %v224 = vmul.f32 %v146, %v81
    %v225 = vmul.f32 %v145, %v82
    %v226 = vmul.f32 %v161, %v83
    %v227 = vmul.f32 %v160, %v84
    %v228 = vmul.f32 %v159, %v85
    %v229 = vmul.f32 %v158, %v86
    %v230 = vmul.f32 %v67, %v87
    %v231 = vmul.f32 %v68, %v88
    %v232 = vmul.f32 %v69, %v89
    %v233 = vmul.f32 %v70, %v90
    %v234 = vmul.f32 %v173, %v91
    %v235 = vmul.f32 %v172, %v92
    %v236 = vmul.f32 %v171, %v93
    %v237 = vmul.f32 %v174, %v94
    %v238 = vmul.f32 %v186, %v95
    %v239 = vmul.f32 %v185, %v96
    %v240 = vmul.f32 %v184, %v97
    %v241 = vmul.f32 %v187, %v98
    %v242 = vmul.f32 %v199, %v99
    %v243 = vmul.f32 %v198, %v100
    %v244 = vmul.f32 %v197, %v101
    %v245 = vmul.f32 %v200, %v102
    %v246 = vmul.f32 %v212, %v103
    %v247 = vmul.f32 %v211, %v104
    %v248 = vmul.f32 %v210, %v105
    %v249 = vmul.f32 %v213, %v106
    %vm250 = vcmask 588800
    %v252 = vsel %vm250, %v107, 0
    %254 = vmatprep.subr.mxu0 0.0
    %255 = vmatpush1.msra.mxu0 0.0
    %256 = vmatprep.subr.mxu0 0.0
    %257 = vmatpush1.msra.mxu0 0.0
    %258 = vmatprep.subr.mxu0 0.0
    %259 = vmatpush1.msra.mxu0 0.0
    %260 = vmatprep.subr.mxu0 0.0
    %261 = vmatpush1.msra.mxu0 0.0
    %262 = vmatprep.subr.mxu0 0.0
    %263 = vmatpush1.msra.mxu0 0.0
    %264 = vmatprep.subr.mxu0 0.0
    %265 = vmatpush1.msra.mxu0 0.0
    %266 = vmatprep.subr.mxu0 0.0
    %267 = vmatpush1.msra.mxu0 0.0
    %268 = vmatprep.subr.mxu0 %v247
    %269 = vmatpush1.msra.mxu0 %v246
    %270 = vmatprep.subr.mxu0 %v243
    %271 = vmatpush1.msra.mxu0 %v242
    %272 = vmatprep.subr.mxu0 %v239
    %273 = vmatpush1.msra.mxu0 %v238
    %274 = vmatprep.subr.mxu0 %v235
    %275 = vmatpush1.msra.mxu0 %v234
    %276 = vmatprep.subr.mxu0 %v231
    %277 = vmatpush1.msra.mxu0 %v230
    %278 = vmatprep.subr.mxu0 %v227
    %279 = vmatpush1.msra.mxu0 %v226
    %280 = vmatprep.subr.mxu0 %v223
    %281 = vmatpush1.msra.mxu0 %v222
    %282 = vmatprep.subr.mxu0 %v219
    %283 = vmatpush1.msra.mxu0 %v218
    %284 = vmatprep.subr.mxu0 %v215
    %285 = vmatpush1.msra.mxu0 %v214
    %286 = vmatprep.subr.mxu0 0.0
    %287 = vmatpush2.msra.mxu0 0.0
    %288 = vmatprep.subr.mxu0 0.0
    %289 = vmatpush2.msra.mxu0 0.0
    %290 = vmatprep.subr.mxu0 0.0
    %291 = vmatpush2.msra.mxu0 0.0
    %292 = vmatprep.subr.mxu0 0.0
    %293 = vmatpush2.msra.mxu0 0.0
    %294 = vmatprep.subr.mxu0 0.0
    %295 = vmatpush2.msra.mxu0 0.0
    %296 = vmatprep.subr.mxu0 0.0
    %297 = vmatpush2.msra.mxu0 0.0
    %298 = vmatprep.subr.mxu0 0.0
    %299 = vmatpush2.msra.mxu0 0.0
    %300 = vmatprep.subr.mxu0 0.0
    %301 = vmatpush2.msra.mxu0 0.0
    %302 = vmatprep.subr.mxu0 0.0
    %303 = vmatpush2.msra.mxu0 0.0
    %304 = vmatprep.subr.mxu0 0.0
    %305 = vmatpush2.msra.mxu0 0.0
    %306 = vmatprep.subr.mxu0 0.0
    %307 = vmatpush2.msra.mxu0 0.0
    %308 = vmatprep.subr.mxu0 0.0
    %309 = vmatpush2.msra.mxu0 0.0
    %310 = vmatprep.subr.mxu0 0.0
    %311 = vmatpush2.msra.mxu0 0.0
    %312 = vmatprep.subr.mxu0 0.0
    %313 = vmatpush2.msra.mxu0 0.0
    %314 = vmatprep.subr.mxu0 0.0
    %315 = vmatpush2.msra.mxu0 0.0
    %316 = vmatprep.subr.mxu0 0.0
    %317 = vmatpush2.msra.mxu0 0.0
    %318 = vmatprep.mubr.f32.mxu0 0.0
    %319 = vmatmul.mubr.f32.gmra.mxu0 %v252
    %v320 = vpop.f32.mrf.mxu0
    %v321 = vadd.f32 0.0, %v320
    %v322 = vpop.f32.mrf.mxu0
    %v323 = vadd.f32 0.0, %v322
    %324 = vdwg.mxu0
    %325 = vmatprep.subr.mxu0 0.0
    %326 = vmatpush1.msra.mxu0 0.0
    %327 = vmatprep.subr.mxu0 0.0
    %328 = vmatpush1.msra.mxu0 0.0
    %329 = vmatprep.subr.mxu0 0.0
    %330 = vmatpush1.msra.mxu0 0.0
    %331 = vmatprep.subr.mxu0 0.0
    %332 = vmatpush1.msra.mxu0 0.0
    %333 = vmatprep.subr.mxu0 0.0
    %334 = vmatpush1.msra.mxu0 0.0
    %335 = vmatprep.subr.mxu0 0.0
    %336 = vmatpush1.msra.mxu0 0.0
    %337 = vmatprep.subr.mxu0 0.0
    %338 = vmatpush1.msra.mxu0 0.0
    %339 = vmatprep.subr.mxu0 %v249
    %340 = vmatpush1.msra.mxu0 %v248
    %341 = vmatprep.subr.mxu0 %v245
    %342 = vmatpush1.msra.mxu0 %v244
    %343 = vmatprep.subr.mxu0 %v241
    %344 = vmatpush1.msra.mxu0 %v240
    %345 = vmatprep.subr.mxu0 %v237
    %346 = vmatpush1.msra.mxu0 %v236
    %347 = vmatprep.subr.mxu0 %v233
    %348 = vmatpush1.msra.mxu0 %v232
    %349 = vmatprep.subr.mxu0 %v229
    %350 = vmatpush1.msra.mxu0 %v228
    %351 = vmatprep.subr.mxu0 %v225
    %352 = vmatpush1.msra.mxu0 %v224
    %353 = vmatprep.subr.mxu0 %v221
    %354 = vmatpush1.msra.mxu0 %v220
    %355 = vmatprep.subr.mxu0 %v217
    %356 = vmatpush1.msra.mxu0 %v216
    %357 = vmatprep.subr.mxu0 0.0
    %358 = vmatpush2.msra.mxu0 0.0
    %359 = vmatprep.subr.mxu0 0.0
    %360 = vmatpush2.msra.mxu0 0.0
    %361 = vmatprep.subr.mxu0 0.0
    %362 = vmatpush2.msra.mxu0 0.0
    %363 = vmatprep.subr.mxu0 0.0
    %364 = vmatpush2.msra.mxu0 0.0
    %365 = vmatprep.subr.mxu0 0.0
    %366 = vmatpush2.msra.mxu0 0.0
    %367 = vmatprep.subr.mxu0 0.0
    %368 = vmatpush2.msra.mxu0 0.0
    %369 = vmatprep.subr.mxu0 0.0
    %370 = vmatpush2.msra.mxu0 0.0
    %371 = vmatprep.subr.mxu0 0.0
    %372 = vmatpush2.msra.mxu0 0.0
    %373 = vmatprep.subr.mxu0 0.0
    %374 = vmatpush2.msra.mxu0 0.0
    %375 = vmatprep.subr.mxu0 0.0
    %376 = vmatpush2.msra.mxu0 0.0
    %377 = vmatprep.subr.mxu0 0.0
    %378 = vmatpush2.msra.mxu0 0.0
    %379 = vmatprep.subr.mxu0 0.0
    %380 = vmatpush2.msra.mxu0 0.0
    %381 = vmatprep.subr.mxu0 0.0
    %382 = vmatpush2.msra.mxu0 0.0
    %383 = vmatprep.subr.mxu0 0.0
    %384 = vmatpush2.msra.mxu0 0.0
    %385 = vmatprep.subr.mxu0 0.0
    %386 = vmatpush2.msra.mxu0 0.0
    %387 = vmatprep.subr.mxu0 0.0
    %388 = vmatpush2.msra.mxu0 0.0
    %389 = vmatprep.mubr.f32.mxu0 0.0
    %390 = vmatmul.mubr.f32.gmra.mxu0 %v252
    %v391 = vpop.f32.mrf.mxu0
    %v392 = vadd.f32 0.0, %v391
    %v393 = vpop.f32.mrf.mxu0
    %v394 = vadd.f32 0.0, %v393
    %395 = vdwg.mxu0
    %v396 = vmax.f32 %v321, 0.0
    %v397 = vmax.f32 %v323, 0.0
    %v398 = vmax.f32 %v392, 0.0
    %v399 = vmax.f32 %v394, 0.0
    %v400 = vld [vmem:[#allocation8] sm:$0xff]
    %401 = vrot.lane.b32.xlu0 %v396, 17
    %v402 = vpop.permute.xlu0 %401
    %403 = vrot.lane.b32.xlu0 %v397, 17
    %v404 = vpop.permute.xlu0 %403
    %405 = vrot.lane.b32.xlu0 %v398, 17
    %v406 = vpop.permute.xlu0 %405
    %407 = vrot.lane.b32.xlu0 %v399, 17
    %v408 = vpop.permute.xlu0 %407
    %v409 = vsel %vm118, %v406, %v408
    %v410 = vsel %vm118, %v404, %v406
    %v411 = vsel %vm118, %v402, %v404
    %v412 = vsel %vm118, %v408, %v402
    %413 = vrot.lane.b32.xlu0 %v396, 16
    %v414 = vpop.permute.xlu0 %413
    %415 = vrot.lane.b32.xlu0 %v397, 16
    %v416 = vpop.permute.xlu0 %415
    %417 = vrot.lane.b32.xlu0 %v398, 16
    %v418 = vpop.permute.xlu0 %417
    %419 = vrot.lane.b32.xlu0 %v399, 16
    %v420 = vpop.permute.xlu0 %419
    %v421 = vsel %vm131, %v418, %v420
    %v422 = vsel %vm131, %v416, %v418
    %v423 = vsel %vm131, %v414, %v416
    %v424 = vsel %vm131, %v420, %v414
    %425 = vrot.lane.b32.xlu0 %v396, 15
    %v426 = vpop.permute.xlu0 %425
    %427 = vrot.lane.b32.xlu0 %v397, 15
    %v428 = vpop.permute.xlu0 %427
    %429 = vrot.lane.b32.xlu0 %v398, 15
    %v430 = vpop.permute.xlu0 %429
    %431 = vrot.lane.b32.xlu0 %v399, 15
    %v432 = vpop.permute.xlu0 %431
    %v433 = vsel %vm144, %v430, %v432
    %v434 = vsel %vm144, %v428, %v430
    %v435 = vsel %vm144, %v426, %v428
    %v436 = vsel %vm144, %v432, %v426
    %437 = vrot.lane.b32.xlu0 %v396, 1
    %v438 = vpop.permute.xlu0 %437
    %439 = vrot.lane.b32.xlu0 %v397, 1
    %v440 = vpop.permute.xlu0 %439
    %441 = vrot.lane.b32.xlu0 %v398, 1
    %v442 = vpop.permute.xlu0 %441
    %443 = vrot.lane.b32.xlu0 %v399, 1
    %v444 = vpop.permute.xlu0 %443
    %v445 = vsel %vm157, %v442, %v444
    %v446 = vsel %vm157, %v440, %v442
    %v447 = vsel %vm157, %v438, %v440
    %v448 = vsel %vm157, %v444, %v438
    %449 = vrot.lane.b32.xlu0 %v396, 127
    %v450 = vpop.permute.xlu0 %449
    %451 = vrot.lane.b32.xlu0 %v397, 127
    %v452 = vpop.permute.xlu0 %451
    %453 = vrot.lane.b32.xlu0 %v398, 127
    %v454 = vpop.permute.xlu0 %453
    %455 = vrot.lane.b32.xlu0 %v399, 127
    %v456 = vpop.permute.xlu0 %455
    %v457 = vsel %vm170, %v454, %v456
    %v458 = vsel %vm170, %v452, %v454
    %v459 = vsel %vm170, %v450, %v452
    %v460 = vsel %vm170, %v456, %v450
    %461 = vrot.lane.b32.xlu0 %v396, 113
    %v462 = vpop.permute.xlu0 %461
    %463 = vrot.lane.b32.xlu0 %v397, 113
    %v464 = vpop.permute.xlu0 %463
    %465 = vrot.lane.b32.xlu0 %v398, 113
    %v466 = vpop.permute.xlu0 %465
    %467 = vrot.lane.b32.xlu0 %v399, 113
    %v468 = vpop.permute.xlu0 %467
    %v469 = vsel %vm183, %v466, %v468
    %v470 = vsel %vm183, %v464, %v466
    %v471 = vsel %vm183, %v462, %v464
    %v472 = vsel %vm183, %v468, %v462
    %473 = vrot.lane.b32.xlu0 %v396, 112
    %v474 = vpop.permute.xlu0 %473
    %475 = vrot.lane.b32.xlu0 %v397, 112
    %v476 = vpop.permute.xlu0 %475
    %477 = vrot.lane.b32.xlu0 %v398, 112
    %v478 = vpop.permute.xlu0 %477
    %479 = vrot.lane.b32.xlu0 %v399, 112
    %v480 = vpop.permute.xlu0 %479
    %v481 = vsel %vm196, %v478, %v480
    %v482 = vsel %vm196, %v476, %v478
    %v483 = vsel %vm196, %v474, %v476
    %v484 = vsel %vm196, %v480, %v474
    %485 = vrot.lane.b32.xlu0 %v396, 111
    %v486 = vpop.permute.xlu0 %485
    %487 = vrot.lane.b32.xlu0 %v397, 111
    %v488 = vpop.permute.xlu0 %487
    %489 = vrot.lane.b32.xlu0 %v398, 111
    %v490 = vpop.permute.xlu0 %489
    %491 = vrot.lane.b32.xlu0 %v399, 111
    %v492 = vpop.permute.xlu0 %491
    %v493 = vsel %vm209, %v490, %v492
    %v494 = vsel %vm209, %v488, %v490
    %v495 = vsel %vm209, %v486, %v488
    %v496 = vsel %vm209, %v492, %v486
    %v497 = vmul.f32 %v412, %v71
    %v498 = vmul.f32 %v411, %v72
    %v499 = vmul.f32 %v410, %v73
    %v500 = vmul.f32 %v409, %v74
    %v501 = vmul.f32 %v424, %v75
    %v502 = vmul.f32 %v423, %v76
    %v503 = vmul.f32 %v422, %v77
    %v504 = vmul.f32 %v421, %v78
    %v505 = vmul.f32 %v436, %v79
    %v506 = vmul.f32 %v435, %v80
    %v507 = vmul.f32 %v434, %v81
    %v508 = vmul.f32 %v433, %v82
    %v509 = vmul.f32 %v448, %v83
    %v510 = vmul.f32 %v447, %v84
    %v511 = vmul.f32 %v446, %v85
    %v512 = vmul.f32 %v445, %v86
    %v513 = vmul.f32 %v396, %v87
    %v514 = vmul.f32 %v397, %v88
    %v515 = vmul.f32 %v398, %v89
    %v516 = vmul.f32 %v399, %v90
    %v517 = vmul.f32 %v459, %v91
    %v518 = vmul.f32 %v458, %v92
    %v519 = vmul.f32 %v457, %v93
    %v520 = vmul.f32 %v460, %v94
    %v521 = vmul.f32 %v471, %v95
    %v522 = vmul.f32 %v470, %v96
    %v523 = vmul.f32 %v469, %v97
    %v524 = vmul.f32 %v472, %v98
    %v525 = vmul.f32 %v483, %v99
    %v526 = vmul.f32 %v482, %v100
    %v527 = vmul.f32 %v481, %v101
    %v528 = vmul.f32 %v484, %v102
    %v529 = vmul.f32 %v495, %v103
    %v530 = vmul.f32 %v494, %v104
    %v531 = vmul.f32 %v493, %v105
    %v532 = vmul.f32 %v496, %v106
    %v534 = vsel %vm250, %v400, 0
    %536 = vmatprep.subr.mxu0 0.0
    %537 = vmatpush1.msra.mxu0 0.0
    %538 = vmatprep.subr.mxu0 0.0
    %539 = vmatpush1.msra.mxu0 0.0
    %540 = vmatprep.subr.mxu0 0.0
    %541 = vmatpush1.msra.mxu0 0.0
    %542 = vmatprep.subr.mxu0 0.0
    %543 = vmatpush1.msra.mxu0 0.0
    %544 = vmatprep.subr.mxu0 0.0
    %545 = vmatpush1.msra.mxu0 0.0
    %546 = vmatprep.subr.mxu0 0.0
    %547 = vmatpush1.msra.mxu0 0.0
    %548 = vmatprep.subr.mxu0 0.0
    %549 = vmatpush1.msra.mxu0 0.0
    %550 = vmatprep.subr.mxu0 %v530
    %551 = vmatpush1.msra.mxu0 %v529
    %552 = vmatprep.subr.mxu0 %v526
    %553 = vmatpush1.msra.mxu0 %v525
    %554 = vmatprep.subr.mxu0 %v522
    %555 = vmatpush1.msra.mxu0 %v521
    %556 = vmatprep.subr.mxu0 %v518
    %557 = vmatpush1.msra.mxu0 %v517
    %558 = vmatprep.subr.mxu0 %v514
    %559 = vmatpush1.msra.mxu0 %v513
    %560 = vmatprep.subr.mxu0 %v510
    %561 = vmatpush1.msra.mxu0 %v509
    %562 = vmatprep.subr.mxu0 %v506
    %563 = vmatpush1.msra.mxu0 %v505
    %564 = vmatprep.subr.mxu0 %v502
    %565 = vmatpush1.msra.mxu0 %v501
    %566 = vmatprep.subr.mxu0 %v498
    %567 = vmatpush1.msra.mxu0 %v497
    %568 = vmatprep.subr.mxu0 0.0
    %569 = vmatpush2.msra.mxu0 0.0
    %570 = vmatprep.subr.mxu0 0.0
    %571 = vmatpush2.msra.mxu0 0.0
    %572 = vmatprep.subr.mxu0 0.0
    %573 = vmatpush2.msra.mxu0 0.0
    %574 = vmatprep.subr.mxu0 0.0
    %575 = vmatpush2.msra.mxu0 0.0
    %576 = vmatprep.subr.mxu0 0.0
    %577 = vmatpush2.msra.mxu0 0.0
    %578 = vmatprep.subr.mxu0 0.0
    %579 = vmatpush2.msra.mxu0 0.0
    %580 = vmatprep.subr.mxu0 0.0
    %581 = vmatpush2.msra.mxu0 0.0
    %582 = vmatprep.subr.mxu0 0.0
    %583 = vmatpush2.msra.mxu0 0.0
    %584 = vmatprep.subr.mxu0 0.0
    %585 = vmatpush2.msra.mxu0 0.0
    %586 = vmatprep.subr.mxu0 0.0
    %587 = vmatpush2.msra.mxu0 0.0
    %588 = vmatprep.subr.mxu0 0.0
    %589 = vmatpush2.msra.mxu0 0.0
    %590 = vmatprep.subr.mxu0 0.0
    %591 = vmatpush2.msra.mxu0 0.0
    %592 = vmatprep.subr.mxu0 0.0
    %593 = vmatpush2.msra.mxu0 0.0
    %594 = vmatprep.subr.mxu0 0.0
    %595 = vmatpush2.msra.mxu0 0.0
    %596 = vmatprep.subr.mxu0 0.0
    %597 = vmatpush2.msra.mxu0 0.0
    %598 = vmatprep.subr.mxu0 0.0
    %599 = vmatpush2.msra.mxu0 0.0
    %600 = vmatprep.mubr.f32.mxu0 0.0
    %601 = vmatmul.mubr.f32.gmra.mxu0 %v534
    %v602 = vpop.f32.mrf.mxu0
    %v603 = vadd.f32 0.0, %v602
    %v604 = vpop.f32.mrf.mxu0
    %v605 = vadd.f32 0.0, %v604
    %606 = vdwg.mxu0
    %607 = vmatprep.subr.mxu0 0.0
    %608 = vmatpush1.msra.mxu0 0.0
    %609 = vmatprep.subr.mxu0 0.0
    %610 = vmatpush1.msra.mxu0 0.0
    %611 = vmatprep.subr.mxu0 0.0
    %612 = vmatpush1.msra.mxu0 0.0
    %613 = vmatprep.subr.mxu0 0.0
    %614 = vmatpush1.msra.mxu0 0.0
    %615 = vmatprep.subr.mxu0 0.0
    %616 = vmatpush1.msra.mxu0 0.0
    %617 = vmatprep.subr.mxu0 0.0
    %618 = vmatpush1.msra.mxu0 0.0
    %619 = vmatprep.subr.mxu0 0.0
    %620 = vmatpush1.msra.mxu0 0.0
    %621 = vmatprep.subr.mxu0 %v532
    %622 = vmatpush1.msra.mxu0 %v531
    %623 = vmatprep.subr.mxu0 %v528
    %624 = vmatpush1.msra.mxu0 %v527
    %625 = vmatprep.subr.mxu0 %v524
    %626 = vmatpush1.msra.mxu0 %v523
    %627 = vmatprep.subr.mxu0 %v520
    %628 = vmatpush1.msra.mxu0 %v519
    %629 = vmatprep.subr.mxu0 %v516
    %630 = vmatpush1.msra.mxu0 %v515
    %631 = vmatprep.subr.mxu0 %v512
    %632 = vmatpush1.msra.mxu0 %v511
    %633 = vmatprep.subr.mxu0 %v508
    %634 = vmatpush1.msra.mxu0 %v507
    %635 = vmatprep.subr.mxu0 %v504
    %636 = vmatpush1.msra.mxu0 %v503
    %637 = vmatprep.subr.mxu0 %v500
    %638 = vmatpush1.msra.mxu0 %v499
    %639 = vmatprep.subr.mxu0 0.0
    %640 = vmatpush2.msra.mxu0 0.0
    %641 = vmatprep.subr.mxu0 0.0
    %642 = vmatpush2.msra.mxu0 0.0
    %643 = vmatprep.subr.mxu0 0.0
    %644 = vmatpush2.msra.mxu0 0.0
    %645 = vmatprep.subr.mxu0 0.0
    %646 = vmatpush2.msra.mxu0 0.0
    %647 = vmatprep.subr.mxu0 0.0
    %648 = vmatpush2.msra.mxu0 0.0
    %649 = vmatprep.subr.mxu0 0.0
    %650 = vmatpush2.msra.mxu0 0.0
    %651 = vmatprep.subr.mxu0 0.0
    %652 = vmatpush2.msra.mxu0 0.0
    %653 = vmatprep.subr.mxu0 0.0
    %654 = vmatpush2.msra.mxu0 0.0
    %655 = vmatprep.subr.mxu0 0.0
    %656 = vmatpush2.msra.mxu0 0.0
    %657 = vmatprep.subr.mxu0 0.0
    %658 = vmatpush2.msra.mxu0 0.0
    %659 = vmatprep.subr.mxu0 0.0
    %660 = vmatpush2.msra.mxu0 0.0
    %661 = vmatprep.subr.mxu0 0.0
    %662 = vmatpush2.msra.mxu0 0.0
    %663 = vmatprep.subr.mxu0 0.0
    %664 = vmatpush2.msra.mxu0 0.0
    %665 = vmatprep.subr.mxu0 0.0
    %666 = vmatpush2.msra.mxu0 0.0
    %667 = vmatprep.subr.mxu0 0.0
    %668 = vmatpush2.msra.mxu0 0.0
    %669 = vmatprep.subr.mxu0 0.0
    %670 = vmatpush2.msra.mxu0 0.0
    %671 = vmatprep.mubr.f32.mxu0 0.0
    %672 = vmatmul.mubr.f32.gmra.mxu0 %v534
    %v673 = vpop.f32.mrf.mxu0
    %v674 = vadd.f32 0.0, %v673
    %v675 = vpop.f32.mrf.mxu0
    %v676 = vadd.f32 0.0, %v675
    %677 = vdwg.mxu0
    %v678 = vmax.f32 %v603, 0.0
    %v679 = vmax.f32 %v605, 0.0
    %v680 = vmax.f32 %v674, 0.0
    %v681 = vmax.f32 %v676, 0.0
    %v682 = vadd.f32 %v678, %v67
    %v683 = vadd.f32 %v679, %v68
    %v684 = vadd.f32 %v680, %v69
    %v685 = vadd.f32 %v681, %v70
    %686 = vst [vmem:[#allocation10] sm:$0xff] %v682
    %687 = vst [vmem:[#allocation10 + $0x8] sm:$0xff] %v683
    %688 = vst [vmem:[#allocation10 + $0x10] sm:$0xff] %v684
    %689 = vst [vmem:[#allocation10 + $0x18] sm:$0xff] %v685
    // Predicated region
    $region34: #{tpu_custom_call.1} parent=1 // pred_check
      _
    $region35: #{tpu_custom_call.1} parent=1 // pred_check_branch
      %691 = sbr.rel (0) target = $region37
    $region36: #{tpu_custom_call.1} parent=1 // pred_region
      %s693 = ssub.s32 512, 512
      %694 = vsyncadd [#allocation4], %s693
      %s696 = sshll.u32 [#allocation10], 4
      %s697 = int_to_ptr.vmem [resolvable:$true] %s696
      %699 = dma.vmem_to_hbm [thread:$0]  %s697, 512, %s4, [#allocation4]
    $region37: #{tpu_custom_call.1} parent=1 // pred_fallthru
      _
    // Predicated region
    $region38: #{tpu_custom_call.1} parent=1 // pred_check
      _
    $region39: #{tpu_custom_call.1} parent=1 // pred_check_branch
      %701 = sbr.rel (0) target = $region41
    $region40: #{tpu_custom_call.1} parent=1 // pred_region
      %702 = dma.done [#allocation4], 512
    $region41: #{tpu_custom_call.1} parent=1 // pred_fallthru
      _
    %703 = vsyncpa [#allocation3], 1
    %704 = vsyncpa [#allocation6], 1
    %705 = vsyncpa [#allocation9], 1
    %706 = vsyncpa [#allocation4], 1

</llo_original>
